<compile_context>
chip_gen: v7x
topology: tpu7x:2x2x1
jax: 0.10.0
libtpu: 0.0.40
codegen_flags: <defaults>
</compile_context>

<pallas_src>
import functools
import math

import jax
import jax.numpy as jnp
import numpy as np
from jax.experimental import pallas as pl
from jax.experimental.pallas import tpu as pltpu


def _l_exp_kernel(x_ref, ph_ref, pwl_ref, o_ref, *, c, mean_val, inv_cp3):
    # x_ref   : (1, C, tile_h, W*L)   input slab (lane axis = W*L, sublane = H)
    # ph_ref  : (hp, tile_h)          one-hot H-pooling matrix (resident)
    # pwl_ref : (W*L, NPwl)           one-hot (W,L)-pooling matrix (resident)
    # o_ref   : (1, 1, 1, 1)          per-(batch, h-tile) partial sum of sq. err.

    # Channel sum without materializing a full f32 copy of the whole C block.
    xs = x_ref[0, 0].astype(jnp.float32)                  # (tile_h, W*L)
    for ci in range(1, c):
        xs = xs + x_ref[0, ci].astype(jnp.float32)

    # Pool over H first (shrinks M by p), then over the flattened (W, L) lanes.
    pooled_h = jnp.dot(ph_ref[...], xs,
                       preferred_element_type=jnp.float32)        # (hp, W*L)
    pooled = jnp.dot(pooled_h, pwl_ref[...],
                     preferred_element_type=jnp.float32) * inv_cp3  # (hp, NPwl)

    diff = pooled - jnp.float32(mean_val)
    sq = jnp.sum(diff * diff, axis=(0, 1), keepdims=True)          # (1, 1)
    o_ref[...] = sq[None, None]                                    # (1, 1, 1, 1)


def _vmem_capacity_bytes():
    try:
        return int(pltpu.get_tpu_info().vmem_capacity_bytes)
    except Exception:
        return 64 * 1024 * 1024  # conservative (v7x per-TensorCore)


def _choose_tile_h(h, p, c, wl, np_wl, itemsize, vmem_cap):
    """Largest whole-patch H slab dividing H whose pipeline footprint fits VMEM."""
    budget = int(vmem_cap * 0.55)             # headroom for compiler scratch etc.
    sub = 8 * max(1, 4 // itemsize)           # sublane multiple (8 f32, 16 bf16)
    base = (p * sub) // math.gcd(p, sub)      # multiple of p and of sub

    def footprint(t):
        hp = t // p
        inp = 2 * c * t * wl * itemsize       # double-buffered input tile
        xs = t * wl * 4                       # f32 channel-sum temp
        pools = hp * t * 4 + wl * np_wl * 4   # resident one-hot matrices
        pooled = hp * wl * 4 + hp * np_wl * 4  # matmul intermediates
        return inp + xs + pools + pooled

    cands = [t for t in range(base, h + 1, base) if h % t == 0]
    if h not in cands:
        cands.append(h)
    best = None
    for t in sorted(cands):
        if footprint(t) <= budget:
            best = t
    if best is None:
        # No whole-patch divisor fits the budget; fall back to smallest legal
        # slab (may exceed the budget for awkward H, but stays correct).
        best = min(cands)
    return best, footprint(best)


def _pool_h_matrix(tile_h, p):
    hp = tile_h // p
    m = np.zeros((hp, tile_h), np.float32)
    idx = np.arange(tile_h)
    m[idx // p, idx] = 1.0
    return jnp.asarray(m)


def _pool_wl_matrix(w, l, p):
    wl = w * l
    np_wl = (w // p) * (l // p)
    q = np.arange(wl)
    patch = (q // l // p) * (l // p) + (q % l) // p
    m = np.zeros((wl, np_wl), np.float32)
    m[q, patch] = 1.0
    return jnp.asarray(m)


def l_exp(x, patch_size, mean_val):
    """Pallas implementation of L_exp.forward(x).  x: (B, C, H, W, L)."""
    b, c, h, w, l = x.shape
    p = patch_size
    assert h % p == 0 and w % p == 0 and l % p == 0
    wl = w * l
    np_wl = (w // p) * (l // p)
    n_patches = (h // p) * np_wl

    # Contiguous (free) reshape: lane axis = W*L, sublane axis = H.
    x4 = x.reshape(b, c, h, wl)
    itemsize = x.dtype.itemsize
    vmem_cap = _vmem_capacity_bytes()
    tile_h, footprint = _choose_tile_h(h, p, c, wl, np_wl, itemsize, vmem_cap)
    n_h_tiles = h // tile_h
    hp = tile_h // p

    # Hoisted one-hot pooling matrices: constant index_map -> DMA'd once,
    # resident in VMEM for the whole grid.
    # TODO(synk): for very large W*L (e.g. >4096) pool_wl grows quadratically;
    # factor the (W, L) pooling into separate L and W contractions instead.
    pool_h = _pool_h_matrix(tile_h, p)        # (hp, tile_h)
    pool_wl = _pool_wl_matrix(w, l, p)        # (wl, np_wl)

    kernel = functools.partial(
        _l_exp_kernel, c=c, mean_val=float(mean_val),
        inv_cp3=1.0 / float(c * p * p * p))

    vmem_limit = int(min(int(0.9 * vmem_cap),
                         max(footprint + (8 << 20), 32 << 20)))

    partials = pl.pallas_call(
        kernel,
        out_shape=jax.ShapeDtypeStruct((b, n_h_tiles, 1, 1), jnp.float32),
        grid_spec=pltpu.PrefetchScalarGridSpec(
            num_scalar_prefetch=0,
            grid=(b, n_h_tiles),
            in_specs=[
                pl.BlockSpec((1, c, tile_h, wl), lambda i, t: (i, 0, t, 0)),
                pl.BlockSpec((hp, tile_h), lambda i, t: (0, 0)),
                pl.BlockSpec((wl, np_wl), lambda i, t: (0, 0)),
            ],
            out_specs=pl.BlockSpec((1, 1, 1, 1), lambda i, t: (i, t, 0, 0)),
        ),
        compiler_params=pltpu.CompilerParams(
            dimension_semantics=("parallel", "parallel"),
            vmem_limit_bytes=vmem_limit),
    )(x4, pool_h, pool_wl)

    # Final mean over the tiny (B, n_h_tiles) partials in plain JAX.
    # TODO(synk): PyTorch does this last step in float64 (DoubleTensor); the
    # TPU kernel path keeps float32.
    return jnp.sum(partials) / jnp.float32(b * n_patches)


def _reference(x, patch_size, mean_val):
    b, c, h, w, l = x.shape
    p = patch_size
    xm = jnp.mean(x, axis=1, keepdims=True)
    pooled = xm.reshape(b, 1, h // p, p, w // p, p, l // p, p).mean(axis=(3, 5, 7))
    return jnp.mean((pooled - mean_val) ** 2)


if __name__ == "__main__":
    key = jax.random.PRNGKey(0)
    B, C, H, W, L = 2, 3, 16, 16, 8          # small shapes consistent with (b,c,h,w,l)
    patch_size, mean_val = 4, 0.6
    x = jax.random.uniform(key, (B, C, H, W, L), dtype=jnp.float32)

    out = jax.block_until_ready(l_exp(x, patch_size, mean_val))
    ref = _reference(x, patch_size, mean_val)
    assert jnp.allclose(out, ref, rtol=1e-5, atol=1e-6), (out, ref)
    print("KERNEL_OK")
</pallas_src>

<mosaic_0001>
module attributes {stable_mosaic.version = 11 : i64} {
  func.func @_l_exp_kernel(%arg0: i32, %arg1: i32, %arg2: memref<1x3x16x128xf32, #tpu.memory_space<vmem>>, %arg3: memref<4x16xf32, #tpu.memory_space<vmem>>, %arg4: memref<128x8xf32, #tpu.memory_space<vmem>>, %arg5: memref<1x1x1x1xf32, #tpu.memory_space<vmem>>) attributes {dimension_semantics = [#tpu.dimension_semantics<parallel>, #tpu.dimension_semantics<parallel>], iteration_bounds = array<i64: 2, 1>, scalar_prefetch = 0 : i64, scratch_operands = 0 : i64, tpu.core_type = #tpu.core_type<tc>, window_params = [{transform_indices = @transform_0, window_bounds = array<i64: 1, 3, 16, 128>}, {pipeline_mode = #tpu.pipeline_mode<synchronous>, transform_indices = @transform_1, window_bounds = array<i64: 4, 16>}, {pipeline_mode = #tpu.pipeline_mode<synchronous>, transform_indices = @transform_2, window_bounds = array<i64: 128, 8>}, {transform_indices = @transform_3, window_bounds = array<i64: 1, 1, 1, 1>}]} {
    %c0 = arith.constant 0 : index
    %c0_0 = arith.constant 0 : index
    %c0_1 = arith.constant 0 : index
    %c0_2 = arith.constant 0 : index
    %0 = vector.load %arg2[%c0, %c0_0, %c0_1, %c0_2] : memref<1x3x16x128xf32, #tpu.memory_space<vmem>>, vector<1x1x16x128xf32>
    %1 = vector.shape_cast %0 : vector<1x1x16x128xf32> to vector<16x128xf32>
    %c0_3 = arith.constant 0 : index
    %c1 = arith.constant 1 : index
    %c0_4 = arith.constant 0 : index
    %c0_5 = arith.constant 0 : index
    %2 = vector.load %arg2[%c0_3, %c1, %c0_4, %c0_5] : memref<1x3x16x128xf32, #tpu.memory_space<vmem>>, vector<1x1x16x128xf32>
    %3 = vector.shape_cast %2 : vector<1x1x16x128xf32> to vector<16x128xf32>
    %4 = arith.addf %1, %3 : vector<16x128xf32>
    %c0_6 = arith.constant 0 : index
    %c2 = arith.constant 2 : index
    %c0_7 = arith.constant 0 : index
    %c0_8 = arith.constant 0 : index
    %5 = vector.load %arg2[%c0_6, %c2, %c0_7, %c0_8] : memref<1x3x16x128xf32, #tpu.memory_space<vmem>>, vector<1x1x16x128xf32>
    %6 = vector.shape_cast %5 : vector<1x1x16x128xf32> to vector<16x128xf32>
    %7 = arith.addf %4, %6 : vector<16x128xf32>
    %c0_9 = arith.constant 0 : index
    %c0_10 = arith.constant 0 : index
    %8 = vector.load %arg3[%c0_9, %c0_10] : memref<4x16xf32, #tpu.memory_space<vmem>>, vector<4x16xf32>
    %cst = arith.constant dense<0.000000e+00> : vector<4x128xf32>
    %9 = tpu.matmul %8, %7, %cst {dimension_numbers = #tpu.dot_dimension_numbers<[1], [0], [0], [1], [0, 0, 1, 1], [], []>} : vector<4x16xf32>, vector<16x128xf32>, vector<4x128xf32> -> vector<4x128xf32>
    %c0_11 = arith.constant 0 : index
    %c0_12 = arith.constant 0 : index
    %10 = vector.load %arg4[%c0_11, %c0_12] : memref<128x8xf32, #tpu.memory_space<vmem>>, vector<128x8xf32>
    %cst_13 = arith.constant dense<0.000000e+00> : vector<4x8xf32>
    %11 = tpu.matmul %9, %10, %cst_13 {dimension_numbers = #tpu.dot_dimension_numbers<[1], [0], [0], [1], [0, 0, 1, 1], [], []>} : vector<4x128xf32>, vector<128x8xf32>, vector<4x8xf32> -> vector<4x8xf32>
    %cst_14 = arith.constant 0.00520833349 : f32
    %12 = vector.broadcast %cst_14 : f32 to vector<4x8xf32>
    %13 = arith.mulf %11, %12 : vector<4x8xf32>
    %cst_15 = arith.constant 6.000000e-01 : f32
    %14 = vector.broadcast %cst_15 : f32 to vector<4x8xf32>
    %15 = arith.subf %13, %14 : vector<4x8xf32>
    %16 = arith.mulf %15, %15 : vector<4x8xf32>
    %17 = vector.shape_cast %16 : vector<4x8xf32> to vector<1x4x8xf32>
    %cst_16 = arith.constant dense<0.000000e+00> : vector<1xf32>
    %18 = vector.multi_reduction <add>, %17, %cst_16 [1, 2] : vector<1x4x8xf32> to vector<1xf32>
    %19 = vector.shape_cast %18 : vector<1xf32> to vector<1x1x1xf32>
    %20 = vector.extract %19[0, 0, 0] : f32 from vector<1x1x1xf32>
    %21 = vector.broadcast %20 : f32 to vector<1x1xf32>
    %22 = vector.shape_cast %21 : vector<1x1xf32> to vector<1x1x1x1xf32>
    %c0_17 = arith.constant 0 : index
    %c0_18 = arith.constant 0 : index
    %c0_19 = arith.constant 0 : index
    %c0_20 = arith.constant 0 : index
    %23 = vector.load %arg5[%c0_17, %c0_18, %c0_19, %c0_20] : memref<1x1x1x1xf32, #tpu.memory_space<vmem>>, vector<1x1x1x1xf32>
    tpu.vector_store %arg5[%c0_17, %c0_18, %c0_19, %c0_20], %22 {strides = array<i32>} : memref<1x1x1x1xf32, #tpu.memory_space<vmem>>, vector<1x1x1x1xf32>,
    return
  }
  func.func @transform_0(%arg0: i32, %arg1: i32) -> (i32, i32, i32, i32) {
    %c0_i32 = arith.constant 0 : i32
    %c0_i32_0 = arith.constant 0 : i32
    %c0_i32_1 = arith.constant 0 : i32
    return %arg0, %c0_i32, %arg1, %c0_i32_0 : i32, i32, i32, i32
  }
  func.func @transform_1(%arg0: i32, %arg1: i32) -> (i32, i32) {
    %c0_i32 = arith.constant 0 : i32
    %c0_i32_0 = arith.constant 0 : i32
    %c0_i32_1 = arith.constant 0 : i32
    return %c0_i32, %c0_i32_0 : i32, i32
  }
  func.func @transform_2(%arg0: i32, %arg1: i32) -> (i32, i32) {
    %c0_i32 = arith.constant 0 : i32
    %c0_i32_0 = arith.constant 0 : i32
    %c0_i32_1 = arith.constant 0 : i32
    return %c0_i32, %c0_i32_0 : i32, i32
  }
  func.func @transform_3(%arg0: i32, %arg1: i32) -> (i32, i32, i32, i32) {
    %c0_i32 = arith.constant 0 : i32
    %c0_i32_0 = arith.constant 0 : i32
    %c0_i32_1 = arith.constant 0 : i32
    return %arg0, %arg1, %c0_i32, %c0_i32_0 : i32, i32, i32, i32
  }
}

</mosaic_0001>

<llo_original>
// kernel: tpu_custom_call.1
$region0: #{tpu_custom_call.1}
  #allocation0 [shape = 'u32[]', space=smem, size = 0x4, offset = 0x4, fixed_abs, tag = 'smem constant byte address 0x4 - core index']
  #allocation1 [shape = 'u32[144,128]{1,0:T(1,128)}', space=vmem, size = 0x12000, scoped, tag = 'internal scratch']
  %s0 = inlined_call_operand.vmem [shape: f32[2,3,16,128], index: 0, kind: input, shape index: {}]
  %s1 = inlined_call_operand.vmem [shape: f32[4,16], index: 1, kind: input, shape index: {}]
  %s2 = inlined_call_operand.vmem [shape: f32[128,8], index: 2, kind: input, shape index: {}]
  %s3 = inlined_call_operand.vmem [shape: f32[2,1,1,1], index: 3, kind: output, shape index: {}]
  %s4 = sld [smem:[#allocation0]]
  $region45: #{tpu_custom_call.1} parent=0
    _
  %s6 = ssub.s32 1, %s4
  %s7 = scalar_select 0, %s6, %s4
  loop: start=0, step=1, limit=4
  $region2: #{tpu_custom_call.1} parent=0 // loop_pre_header
    _
  $region3: #{tpu_custom_call.1} parent=0 // loop_header
    %s9 = sphi 0, %s13
    %p10 = scmp.ge.s32.totalorder %s9, 4
    %s16 = sphi 0, %s28
    %s17 = sphi 0, %s24
    %s18 = sphi 0, %s16
    %s19 = sphi 0, %s17
    %s20 = sphi 0, %s18
    %s21 = sphi 0, %s19
    %s33 = sphi 0, %s35
    %s36 = sphi 0, %s33
    %s37 = sphi 0, %s36
    %s53 = sphi 0, %s37
    %s57 = sphi 0, %s57
    %s59 = sphi 0, %s57
    %s60 = sphi 0, %s59
    %s74 = sphi 0, %s60
    %s78 = sphi 0, %s78
    %s80 = sphi 0, %s78
    %s81 = sphi 0, %s80
    %s95 = sphi 0, %s81
    %s103 = sphi 0, %s105
    %s106 = sphi 0, %s103
    %s107 = sphi 0, %s106
    %s123 = sphi 0, %s107
  $region4: #{tpu_custom_call.1} parent=0 // loop_header_branch
    %12 = sbr.rel (%p10) target = $region8
  $region5: #{tpu_custom_call.1} parent=0 // loop_body
    %s14 = ssub.s32 %s9, 1
    %s15 = ssub.s32 %s9, 2
    %s22 = sadd.s32 1, %s17
    %p23 = scmp.ge.s32.totalorder %s22, 1
    %s24 = scalar_select %p23, 0, %s22
    %s25 = sadd.s32 1, %s16
    %s26 = scalar_select %p23, %s25, %s16
    %p27 = scmp.ge.s32.totalorder %s26, 2
    %s28 = scalar_select %p27, 0, %s26
    %s29 = ssub.s32 %s16, %s28
    %s30 = ssub.s32 %s17, %s24
    %s31 = sor.u32 %s29, %s30
    %p32 = scmp.eq.s32.totalorder %s31, 0
    %s34 = sadd.s32 %s33, 1
    %s35 = scalar_select %p32, %s33, %s34
    %p38 = pneg %p32
    %p39 = scmp.eq.s32.totalorder %s9, 1
    %p40 = por %p38, %p39
    %p41 = scmp.ne.s32.totalorder %s33, %s36
    %p42 = scmp.eq.s32.totalorder %s9, 0
    %p43 = por %p41, %p42
    %p44 = scmp.ne.s32.totalorder %s33, %s36
    %p45 = scmp.eq.s32.totalorder %s14, 1
    %p46 = por %p44, %p45
    %p47 = scmp.ne.s32.totalorder %s36, %s37
    %p48 = scmp.eq.s32.totalorder %s14, 0
    %p49 = por %p47, %p48
    %p50 = scmp.ne.s32.totalorder %s36, %s37
    %p51 = scmp.eq.s32.totalorder %s15, 1
    %p52 = por %p50, %p51
    %p54 = scmp.ne.s32.totalorder %s37, %s53
    %p55 = scmp.eq.s32.totalorder %s15, 0
    %p56 = por %p54, %p55
    %s58 = sadd.s32 %s57, 1
    %p61 = scmp.eq.s32.totalorder %s9, 1
    %p62 = scmp.ne.s32.totalorder %s57, %s59
    %p63 = scmp.eq.s32.totalorder %s9, 0
    %p64 = por %p62, %p63
    %p65 = scmp.ne.s32.totalorder %s57, %s59
    %p66 = scmp.eq.s32.totalorder %s14, 1
    %p67 = por %p65, %p66
    %p68 = scmp.ne.s32.totalorder %s59, %s60
    %p69 = scmp.eq.s32.totalorder %s14, 0
    %p70 = por %p68, %p69
    %p71 = scmp.ne.s32.totalorder %s59, %s60
    %p72 = scmp.eq.s32.totalorder %s15, 1
    %p73 = por %p71, %p72
    %p75 = scmp.ne.s32.totalorder %s60, %s74
    %p76 = scmp.eq.s32.totalorder %s15, 0
    %p77 = por %p75, %p76
    %s79 = sadd.s32 %s78, 1
    %p82 = scmp.eq.s32.totalorder %s9, 1
    %p83 = scmp.ne.s32.totalorder %s78, %s80
    %p84 = scmp.eq.s32.totalorder %s9, 0
    %p85 = por %p83, %p84
    %p86 = scmp.ne.s32.totalorder %s78, %s80
    %p87 = scmp.eq.s32.totalorder %s14, 1
    %p88 = por %p86, %p87
    %p89 = scmp.ne.s32.totalorder %s80, %s81
    %p90 = scmp.eq.s32.totalorder %s14, 0
    %p91 = por %p89, %p90
    %p92 = scmp.ne.s32.totalorder %s80, %s81
    %p93 = scmp.eq.s32.totalorder %s15, 1
    %p94 = por %p92, %p93
    %p96 = scmp.ne.s32.totalorder %s81, %s95
    %p97 = scmp.eq.s32.totalorder %s15, 0
    %p98 = por %p96, %p97
    %s99 = ssub.s32 %s16, %s28
    %s100 = ssub.s32 %s17, %s24
    %s101 = sor.u32 %s99, %s100
    %p102 = scmp.eq.s32.totalorder %s101, 0
    %s104 = sadd.s32 %s103, 1
    %s105 = scalar_select %p102, %s103, %s104
    %p108 = pneg %p102
    %p109 = scmp.eq.s32.totalorder %s9, 1
    %p110 = por %p108, %p109
    %p111 = scmp.ne.s32.totalorder %s103, %s106
    %p112 = scmp.eq.s32.totalorder %s9, 0
    %p113 = por %p111, %p112
    %p114 = scmp.ne.s32.totalorder %s103, %s106
    %p115 = scmp.eq.s32.totalorder %s14, 1
    %p116 = por %p114, %p115
    %p117 = scmp.ne.s32.totalorder %s106, %s107
    %p118 = scmp.eq.s32.totalorder %s14, 0
    %p119 = por %p117, %p118
    %p120 = scmp.ne.s32.totalorder %s106, %s107
    %p121 = scmp.eq.s32.totalorder %s15, 1
    %p122 = por %p120, %p121
    %p124 = scmp.ne.s32.totalorder %s107, %s123
    %p125 = scmp.eq.s32.totalorder %s15, 0
    %p126 = por %p124, %p125
    %p127 = scmp.le.s32.totalorder 1, %s9
    %p128 = scmp.lt.s32.totalorder %s9, 3
    %p129 = pnand %p127, %p128
    %p130 = pneg %p129
    // Predicated region
    $region9: #{tpu_custom_call.1} parent=5 // pred_check
      _
    $region10: #{tpu_custom_call.1} parent=5 // pred_check_branch
      %132 = sbr.rel (%p129) target = $region12
    $region11: #{tpu_custom_call.1} parent=5 // pred_region
      %s133 = ssub.s32 %s9, 1
      // Predicated region
      $region13: #{tpu_custom_call.1} parent=11 // pred_check
        %p134 = pneg %p70
      $region14: #{tpu_custom_call.1} parent=11 // pred_check_branch
        %136 = sbr.rel (%p134) target = $region16
      $region15: #{tpu_custom_call.1} parent=11 // pred_region
        _
      $region16: #{tpu_custom_call.1} parent=11 // pred_fallthru
        _
      // Predicated region
      $region17: #{tpu_custom_call.1} parent=11 // pred_check
        %p137 = pneg %p91
      $region18: #{tpu_custom_call.1} parent=11 // pred_check_branch
        %139 = sbr.rel (%p137) target = $region20
      $region19: #{tpu_custom_call.1} parent=11 // pred_region
        _
      $region20: #{tpu_custom_call.1} parent=11 // pred_fallthru
        _
    $region12: #{tpu_custom_call.1} parent=5 // pred_fallthru
      _
    %p140 = scmp.lt.s32.totalorder %s9, 2
    // Predicated region
    $region21: #{tpu_custom_call.1} parent=5 // pred_check
      %p141 = pneg %p140
    $region22: #{tpu_custom_call.1} parent=5 // pred_check_branch
      %143 = sbr.rel (%p141) target = $region24
    $region23: #{tpu_custom_call.1} parent=5 // pred_region
      // Predicated region
      $region25: #{tpu_custom_call.1} parent=23 // pred_check
        %p144 = pneg %p43
      $region26: #{tpu_custom_call.1} parent=23 // pred_check_branch
        %146 = sbr.rel (%p144) target = $region28
      $region27: #{tpu_custom_call.1} parent=23 // pred_region
        %s147 = smul.u32 2, %s17
        %p148 = scmp.lt.s32.totalorder %s16, 1
        %s149 = scalar_select %p148, %s16, 1
        %p150 = scmp.lt.s32.totalorder %s147, 1
        %s151 = scalar_select %p150, %s147, 1
        %s152 = smul.addr %s149, 6
        %s153 = sadd.s32 %s151, %s152
        %s154 = smul.addr %s153, 8
        %s155 = scalar_lea.vmem %s0, %s154
        %s156 = smul.u32 2, %s17
      $region28: #{tpu_custom_call.1} parent=23 // pred_fallthru
        _
    $region24: #{tpu_custom_call.1} parent=5 // pred_fallthru
      _
    %p157 = scmp.le.s32.totalorder 1, %s9
    %p158 = scmp.lt.s32.totalorder %s9, 3
    %p159 = pnand %p157, %p158
    %p160 = pneg %p159
    // Predicated region
    $region29: #{tpu_custom_call.1} parent=5 // pred_check
      _
    $region30: #{tpu_custom_call.1} parent=5 // pred_check_branch
      %162 = sbr.rel (%p159) target = $region32
    $region31: #{tpu_custom_call.1} parent=5 // pred_region
      %s163 = ssub.s32 %s9, 1
      %s164 = smul.u32 2, %s19
      %p165 = scmp.lt.s32.totalorder %s18, 1
      %s166 = scalar_select %p165, %s18, 1
      %p167 = scmp.lt.s32.totalorder %s164, 1
      %s168 = scalar_select %p167, %s164, 1
      %s169 = smul.addr %s166, 6
      %s170 = sadd.s32 %s168, %s169
      %s171 = smul.addr %s170, 8
      %s172 = scalar_lea.vmem %s0, %s171
      %p173 = pneg %p49
      %p174 = pneg %p46
      %p175 = pneg %p70
      %p176 = pneg %p67
      %p177 = pneg %p91
      %p178 = pneg %p88
      %p179 = pneg %p119
      %p180 = pneg %p116
      %p181 = scmp.lt.s32.totalorder %s18, 1
      %s182 = scalar_select %p181, %s18, 1
      %p183 = scmp.lt.s32.totalorder %s19, 0
      %s184 = scalar_select %p183, %s19, 0
      %s185 = sadd.s32 %s184, %s182
      %s186 = scalar_lea.vmem %s3, %s185
      %s187 = smul.u32 2, %s19
      %p188 = scmp.lt.s32.totalorder %s18, 1
      %s189 = scalar_select %p188, %s18, 1
      %p190 = scmp.lt.s32.totalorder %s187, 1
      %s191 = scalar_select %p190, %s187, 1
      %s192 = smul.addr %s189, 6
      %s193 = sadd.s32 %s191, %s192
      %s194 = smul.addr %s193, 8
      %s195 = scalar_lea.vmem %s0, %s194
      %s196 = smul.u32 2, %s19
      %p197 = scmp.lt.s32.totalorder %s18, 1
      %s198 = scalar_select %p197, %s18, 1
      %p199 = scmp.lt.s32.totalorder %s19, 0
      %s200 = scalar_select %p199, %s19, 0
      %s201 = sadd.s32 %s200, %s198
      %s202 = scalar_lea.vmem %s3, %s201
      %v203 = vld [vmem:[%s195] sm:$0xff]
      %v204 = vld [vmem:[%s195 + $0x8] sm:$0xff]
      %s205 = scalar_lea.vmem %s195, 16
      %v206 = vld [vmem:[%s205] sm:$0xff]
      %v207 = vld [vmem:[%s205 + $0x8] sm:$0xff]
      %v208 = vadd.f32 %v203, %v206
      %v209 = vadd.f32 %v204, %v207
      %s210 = scalar_lea.vmem %s195, 32
      %v211 = vld [vmem:[%s210] sm:$0xff]
      %v212 = vld [vmem:[%s210 + $0x8] sm:$0xff]
      %v213 = vadd.f32 %v208, %v211
      %v214 = vadd.f32 %v209, %v212
      %v215 = vld [vmem:[%s1] sm:$0xf]
      %vm216 = vcmask 130048
      %v218 = vsel %vm216, %v215, 0
      %220 = vmatprep.subr.mxu0 0.0
      %221 = vmatpush1.msra.mxu0 %v213
      %222 = vmatprep.subr.mxu0 0.0
      %223 = vmatpush1.msra.mxu0 %v214
      %224 = vmatprep.subr.mxu0 0.0
      %225 = vmatpush1.msra.mxu0 0.0
      %226 = vmatprep.subr.mxu0 0.0
      %227 = vmatpush1.msra.mxu0 0.0
      %228 = vmatprep.subr.mxu0 0.0
      %229 = vmatpush1.msra.mxu0 0.0
      %230 = vmatprep.subr.mxu0 0.0
      %231 = vmatpush1.msra.mxu0 0.0
      %232 = vmatprep.subr.mxu0 0.0
      %233 = vmatpush1.msra.mxu0 0.0
      %234 = vmatprep.subr.mxu0 0.0
      %235 = vmatpush1.msra.mxu0 0.0
      %236 = vmatprep.subr.mxu0 0.0
      %237 = vmatpush1.msra.mxu0 0.0
      %238 = vmatprep.subr.mxu0 0.0
      %239 = vmatpush1.msra.mxu0 0.0
      %240 = vmatprep.subr.mxu0 0.0
      %241 = vmatpush1.msra.mxu0 0.0
      %242 = vmatprep.subr.mxu0 0.0
      %243 = vmatpush1.msra.mxu0 0.0
      %244 = vmatprep.subr.mxu0 0.0
      %245 = vmatpush1.msra.mxu0 0.0
      %246 = vmatprep.subr.mxu0 0.0
      %247 = vmatpush1.msra.mxu0 0.0
      %248 = vmatprep.subr.mxu0 0.0
      %249 = vmatpush1.msra.mxu0 0.0
      %250 = vmatprep.subr.mxu0 0.0
      %251 = vmatpush1.msra.mxu0 0.0
      %252 = vmatprep.subr.mxu0 0.0
      %253 = vmatpush1.msra.mxu0 0.0
      %254 = vmatprep.subr.mxu0 0.0
      %255 = vmatpush1.msra.mxu0 0.0
      %256 = vmatprep.subr.mxu0 0.0
      %257 = vmatpush1.msra.mxu0 0.0
      %258 = vmatprep.subr.mxu0 0.0
      %259 = vmatpush1.msra.mxu0 0.0
      %260 = vmatprep.subr.mxu0 0.0
      %261 = vmatpush1.msra.mxu0 0.0
      %262 = vmatprep.subr.mxu0 0.0
      %263 = vmatpush1.msra.mxu0 0.0
      %264 = vmatprep.subr.mxu0 0.0
      %265 = vmatpush1.msra.mxu0 0.0
      %266 = vmatprep.subr.mxu0 0.0
      %267 = vmatpush1.msra.mxu0 0.0
      %268 = vmatprep.subr.mxu0 0.0
      %269 = vmatpush1.msra.mxu0 0.0
      %270 = vmatprep.subr.mxu0 0.0
      %271 = vmatpush1.msra.mxu0 0.0
      %272 = vmatprep.subr.mxu0 0.0
      %273 = vmatpush1.msra.mxu0 0.0
      %274 = vmatprep.subr.mxu0 0.0
      %275 = vmatpush1.msra.mxu0 0.0
      %276 = vmatprep.subr.mxu0 0.0
      %277 = vmatpush1.msra.mxu0 0.0
      %278 = vmatprep.subr.mxu0 0.0
      %279 = vmatpush1.msra.mxu0 0.0
      %280 = vmatprep.subr.mxu0 0.0
      %281 = vmatpush1.msra.mxu0 0.0
      %282 = vmatprep.subr.mxu0 0.0
      %283 = vmatpush1.msra.mxu0 0.0
      %284 = vmatprep.mubr.f32.mxu0 0.0
      %285 = vmatmul.mubr.f32.gmra.mrb[0].mxu0 %v218
      %v286 = vpop.f32.mrb[0].mxu0
      %v287 = vadd.f32 0.0, %v286
      %v288 = vpop.f32.mrb[0].mxu0
      %289 = vdwg.mxu0
      %v290 = vld [vmem:[%s2] sm:$0xff]
      %v291 = vld [vmem:[%s2 + $0x8] sm:$0xff]
      %v292 = vld [vmem:[%s2 + $0x10] sm:$0xff]
      %v293 = vld [vmem:[%s2 + $0x18] sm:$0xff]
      %v294 = vld [vmem:[%s2 + $0x20] sm:$0xff]
      %v295 = vld [vmem:[%s2 + $0x28] sm:$0xff]
      %v296 = vld [vmem:[%s2 + $0x30] sm:$0xff]
      %v297 = vld [vmem:[%s2 + $0x38] sm:$0xff]
      %v298 = vld [vmem:[%s2 + $0x40] sm:$0xff]
      %v299 = vld [vmem:[%s2 + $0x48] sm:$0xff]
      %v300 = vld [vmem:[%s2 + $0x50] sm:$0xff]
      %v301 = vld [vmem:[%s2 + $0x58] sm:$0xff]
      %v302 = vld [vmem:[%s2 + $0x60] sm:$0xff]
      %v303 = vld [vmem:[%s2 + $0x68] sm:$0xff]
      %v304 = vld [vmem:[%s2 + $0x70] sm:$0xff]
      %v305 = vld [vmem:[%s2 + $0x78] sm:$0xff]
      %306 = vmatprep.subr.mxu0 0.0
      %307 = vmatpush1.msra.mxu0 %v290
      %308 = vmatprep.subr.mxu0 0.0
      %309 = vmatpush1.msra.mxu0 %v291
      %310 = vmatprep.subr.mxu0 0.0
      %311 = vmatpush1.msra.mxu0 %v292
      %312 = vmatprep.subr.mxu0 0.0
      %313 = vmatpush1.msra.mxu0 %v293
      %314 = vmatprep.subr.mxu0 0.0
      %315 = vmatpush1.msra.mxu0 %v294
      %316 = vmatprep.subr.mxu0 0.0
      %317 = vmatpush1.msra.mxu0 %v295
      %318 = vmatprep.subr.mxu0 0.0
      %319 = vmatpush1.msra.mxu0 %v296
      %320 = vmatprep.subr.mxu0 0.0
      %321 = vmatpush1.msra.mxu0 %v297
      %322 = vmatprep.subr.mxu0 0.0
      %323 = vmatpush1.msra.mxu0 %v298
      %324 = vmatprep.subr.mxu0 0.0
      %325 = vmatpush1.msra.mxu0 %v299
      %326 = vmatprep.subr.mxu0 0.0
      %327 = vmatpush1.msra.mxu0 %v300
      %328 = vmatprep.subr.mxu0 0.0
      %329 = vmatpush1.msra.mxu0 %v301
      %330 = vmatprep.subr.mxu0 0.0
      %331 = vmatpush1.msra.mxu0 %v302
      %332 = vmatprep.subr.mxu0 0.0
      %333 = vmatpush1.msra.mxu0 %v303
      %334 = vmatprep.subr.mxu0 0.0
      %335 = vmatpush1.msra.mxu0 %v304
      %336 = vmatprep.subr.mxu0 0.0
      %337 = vmatpush1.msra.mxu0 %v305
      %338 = vmatprep.subr.mxu0 0.0
      %339 = vmatpush1.msra.mxu0 0.0
      %340 = vmatprep.subr.mxu0 0.0
      %341 = vmatpush1.msra.mxu0 0.0
      %342 = vmatprep.subr.mxu0 0.0
      %343 = vmatpush1.msra.mxu0 0.0
      %344 = vmatprep.subr.mxu0 0.0
      %345 = vmatpush1.msra.mxu0 0.0
      %346 = vmatprep.subr.mxu0 0.0
      %347 = vmatpush1.msra.mxu0 0.0
      %348 = vmatprep.subr.mxu0 0.0
      %349 = vmatpush1.msra.mxu0 0.0
      %350 = vmatprep.subr.mxu0 0.0
      %351 = vmatpush1.msra.mxu0 0.0
      %352 = vmatprep.subr.mxu0 0.0
      %353 = vmatpush1.msra.mxu0 0.0
      %354 = vmatprep.subr.mxu0 0.0
      %355 = vmatpush1.msra.mxu0 0.0
      %356 = vmatprep.subr.mxu0 0.0
      %357 = vmatpush1.msra.mxu0 0.0
      %358 = vmatprep.subr.mxu0 0.0
      %359 = vmatpush1.msra.mxu0 0.0
      %360 = vmatprep.subr.mxu0 0.0
      %361 = vmatpush1.msra.mxu0 0.0
      %362 = vmatprep.subr.mxu0 0.0
      %363 = vmatpush1.msra.mxu0 0.0
      %364 = vmatprep.subr.mxu0 0.0
      %365 = vmatpush1.msra.mxu0 0.0
      %366 = vmatprep.subr.mxu0 0.0
      %367 = vmatpush1.msra.mxu0 0.0
      %368 = vmatprep.subr.mxu0 0.0
      %369 = vmatpush1.msra.mxu0 0.0
      %370 = vmatprep.mubr.f32.mxu0 0.0
      %371 = vmatmul.mubr.f32.gmra.mrb[0].mxu0 %v287
      %v372 = vpop.f32.mrb[0].mxu0
      %v373 = vadd.f32 0.0, %v372
      %v374 = vpop.f32.mrb[0].mxu0
      %375 = vdwg.mxu0
      %v376 = vmul.f32 %v373, 0.0052083335
      %v377 = vsub.f32 %v376, 0.6
      %v378 = vmul.f32 %v377, %v377
      %vm379 = vcmask 60416
      %v380 = vsel %vm379, %v378, 0.0
      %381 = vadd.xlane.f32.xlu0 %v380
      %v382 = vpop.xlane.xlu0 %381
      %v383 = vrot.slane %v382, 4
      %v384 = vadd.f32 %v382, %v383
      %v385 = vrot.slane %v384, 2
      %v386 = vadd.f32 %v384, %v385
      %v387 = vrot.slane %v386, 1
      %v388 = vadd.f32 %v386, %v387
      %s389 = vtos %v388
      %v390 = vstv %s389
      %vm391 = vcmask 0
      %392 = vst.msk [vmem:[%s202] sm:$0x1] %vm391, %v390
      %p393 = scmp.lt.s32.totalorder %s18, 1
      %s394 = scalar_select %p393, %s18, 1
      %p395 = scmp.lt.s32.totalorder %s19, 0
      %s396 = scalar_select %p395, %s19, 0
      %s397 = sadd.s32 %s396, %s394
      %s398 = scalar_lea.vmem %s3, %s397
      // Predicated region
      $region33: #{tpu_custom_call.1} parent=31 // pred_check
        %p399 = pneg %p116
      $region34: #{tpu_custom_call.1} parent=31 // pred_check_branch
        %401 = sbr.rel (%p399) target = $region36
      $region35: #{tpu_custom_call.1} parent=31 // pred_region
        _
      $region36: #{tpu_custom_call.1} parent=31 // pred_fallthru
        _
    $region32: #{tpu_custom_call.1} parent=5 // pred_fallthru
      _
    %p402 = scmp.le.s32.totalorder 2, %s9
    // Predicated region
    $region37: #{tpu_custom_call.1} parent=5 // pred_check
      %p403 = pneg %p402
    $region38: #{tpu_custom_call.1} parent=5 // pred_check_branch
      %405 = sbr.rel (%p403) target = $region40
    $region39: #{tpu_custom_call.1} parent=5 // pred_region
      %s406 = ssub.s32 %s9, 2
      // Predicated region
      $region41: #{tpu_custom_call.1} parent=39 // pred_check
        %p407 = pneg %p122
      $region42: #{tpu_custom_call.1} parent=39 // pred_check_branch
        %409 = sbr.rel (%p407) target = $region44
      $region43: #{tpu_custom_call.1} parent=39 // pred_region
        %p410 = scmp.lt.s32.totalorder %s20, 1
        %s411 = scalar_select %p410, %s20, 1
        %p412 = scmp.lt.s32.totalorder %s21, 0
        %s413 = scalar_select %p412, %s21, 0
        %s414 = sadd.s32 %s413, %s411
        %s415 = scalar_lea.vmem %s3, %s414
      $region44: #{tpu_custom_call.1} parent=39 // pred_fallthru
        _
    $region40: #{tpu_custom_call.1} parent=5 // pred_fallthru
      _
  $region6: #{tpu_custom_call.1} parent=0 // loop_footer
    %s13 = sadd.s32 1, %s9
  $region7: #{tpu_custom_call.1} parent=0 // loop_footer_branch
    %8 = sbr.rel target = $region3
  $region8: #{tpu_custom_call.1} parent=0 // loop_exit
    _

</llo_original>
